<compile_context>
chip_gen: v6e
topology: v6e:2x2x1
jax: 0.10.0
libtpu: 0.0.40
codegen_flags: <defaults>
</compile_context>

<pallas_src>
import functools

import jax
import jax.numpy as jnp
from jax.experimental import pallas as pl
from jax.experimental.pallas import tpu as pltpu

_FIELDS = ("event_name", "level", "fqid", "room_fqid")


def _round_up(x, m):
    return ((x + m - 1) // m) * m


def _psp_embed_fused_kernel(idx_ref, tab_ref, out_ref, *, row_bases, vocabs, out_dim):
    """Fused 4-table gather: one summed one-hot, one MXU matmul, one store."""
    idx = idx_ref[...]                       # (tile_n, 4) int32
    tab = tab_ref[...]                       # (V_pad, D_pad) f32, block-diagonal
    tile_n = idx.shape[0]
    v_pad = tab.shape[0]

    # Single (tile_n, V_pad) one-hot: one iota, 4 compares OR'd, one cast.
    # Row bases / vocab sizes are Python ints -> immediate scalar constants
    # (nothing captured).  Clamp keeps bad indices inside their own table.
    vocab_iota = jax.lax.broadcasted_iota(jnp.int32, (tile_n, v_pad), 1)
    hit = None
    for c, (base, voc) in enumerate(zip(row_bases, vocabs)):
        col = jnp.clip(idx[:, c:c + 1], 0, voc - 1) + base   # (tile_n, 1)
        h = vocab_iota == col
        hit = h if hit is None else jnp.logical_or(hit, h)
    onehot = hit.astype(tab.dtype)           # (tile_n, V_pad)

    # One MXU pass; result columns are laid out as the concat
    # [event_name | level | fqid | room_fqid] (+ zero padding up to D_pad).
    res = jnp.dot(onehot, tab, preferred_element_type=jnp.float32)
    # Store only the real D columns (masked partial store; avoids 3.5x HBM
    # writeback inflation and the wrapper-side slice round-trip).
    out_ref[...] = res[:, :out_dim].astype(out_ref.dtype)


def make_fused_table(tables):
    """One-time ("module init") prep: block-diagonal fused table + metadata."""
    vocabs = tuple(int(t.shape[0]) for t in tables)
    dims = tuple(int(t.shape[1]) for t in tables)
    v_pad = _round_up(sum(vocabs), 128)      # K dim of the fused matmul
    d_pad = _round_up(sum(dims), 128)        # lane-dense table width

    fused = jnp.zeros((v_pad, d_pad), jnp.float32)
    row_bases = []
    r = c = 0
    for t, v, d in zip(tables, vocabs, dims):
        fused = fused.at[r:r + v, c:c + d].set(t.astype(jnp.float32))
        row_bases.append(r)
        r += v
        c += d
    return fused, tuple(row_bases), vocabs, dims


def psp_event_embedding(x, fused_table, row_bases, vocabs, dims, *, tile_n=1024):
    """Forward pass.  x: dict of (B, S) int index arrays."""
    en, lv, fq, rf = (x[k] for k in _FIELDS)
    B, S = en.shape
    N = B * S
    D = sum(dims)
    v_pad, d_pad = (int(s) for s in fused_table.shape)

    # One stacked (N, 4) index array -> a single lane-dense index DMA per tile.
    idx = jnp.stack(
        [a.astype(jnp.int32) for a in (en, lv, fq, rf)], axis=-1
    ).reshape(N, 4)

    # Big tiles amortize the ~0.35 us per-step overhead; clamp for tiny N so
    # the block never needs more rows than exist (and stays a multiple of 8).
    tile_n = max(8, min(tile_n, _round_up(N, 8)))
    grid = (pl.cdiv(N, tile_n),)

    cost = pl.CostEstimate(
        flops=2 * grid[0] * tile_n * v_pad * d_pad,
        transcendentals=0,
        bytes_accessed=idx.size * 4 + fused_table.size * 4 + N * D * 4,
    )

    out = pl.pallas_call(
        functools.partial(
            _psp_embed_fused_kernel,
            row_bases=row_bases, vocabs=vocabs, out_dim=D),
        out_shape=jax.ShapeDtypeStruct((N, D), jnp.float32),
        grid_spec=pl.GridSpec(
            grid=grid,
            in_specs=[
                pl.BlockSpec((tile_n, 4), lambda i: (i, 0)),         # indices
                pl.BlockSpec((v_pad, d_pad), lambda i: (0, 0)),      # fused table
            ],
            out_specs=pl.BlockSpec((tile_n, D), lambda i: (i, 0)),
        ),
        compiler_params=pltpu.CompilerParams(
            dimension_semantics=("parallel",)),
        cost_estimate=cost,
    )(idx, fused_table)

    return out.reshape(B, S, D)


def _make_table(key, nunique, dim):
    t = jax.random.normal(key, (nunique, dim), dtype=jnp.float32)
    # padding_idx=0 -> row 0 is all zeros
    return t.at[0].set(0.0)


if __name__ == "__main__":
    # small synthetic config, consistent with the module __init__ signature
    event_name_nunique, event_name_dim = 16, 8
    level_nunique, level_dim = 24, 4
    fqid_nunique, fqid_dim = 32, 16
    room_fqid_nunique, room_fqid_dim = 20, 8

    B, S = 2, 8

    key = jax.random.PRNGKey(0)
    k_en, k_lv, k_fq, k_rf, k_i1, k_i2, k_i3, k_i4 = jax.random.split(key, 8)

    tables = [
        _make_table(k_en, event_name_nunique, event_name_dim),
        _make_table(k_lv, level_nunique, level_dim),
        _make_table(k_fq, fqid_nunique, fqid_dim),
        _make_table(k_rf, room_fqid_nunique, room_fqid_dim),
    ]

    x = {
        "event_name": jax.random.randint(k_i1, (B, S), 0, event_name_nunique, jnp.int32),
        "level":      jax.random.randint(k_i2, (B, S), 0, level_nunique, jnp.int32),
        "fqid":       jax.random.randint(k_i3, (B, S), 0, fqid_nunique, jnp.int32),
        "room_fqid":  jax.random.randint(k_i4, (B, S), 0, room_fqid_nunique, jnp.int32),
    }

    # one-time prep (the "module init"), then the forward
    fused, row_bases, vocabs, dims = make_fused_table(tables)
    out = psp_event_embedding(x, fused, row_bases, vocabs, dims)
    out = jax.block_until_ready(out)

    # pure-JAX reference (torch.nn.Embedding == row gather, concat on dim 2)
    ref = jnp.concatenate(
        [jnp.take(t, x[k], axis=0) for t, k in zip(tables, _FIELDS)], axis=2)
    assert out.shape == (B, S, event_name_dim + level_dim + fqid_dim + room_fqid_dim)
    assert jnp.allclose(out, ref, atol=1e-5), "mismatch vs reference"

    print("KERNEL_OK")
</pallas_src>

<mosaic_0001>
module attributes {stable_mosaic.version = 11 : i64} {
  func.func @_psp_embed_fused_kernel(%arg0: i32, %arg1: memref<16x4xi32, #tpu.memory_space<vmem>>, %arg2: memref<128x128xf32, #tpu.memory_space<vmem>>, %arg3: memref<16x36xf32, #tpu.memory_space<vmem>>) attributes {dimension_semantics = [#tpu.dimension_semantics<parallel>], iteration_bounds = array<i64: 1>, scalar_prefetch = 0 : i64, scratch_operands = 0 : i64, tpu.core_type = #tpu.core_type<tc>, window_params = [{transform_indices = @transform_0, window_bounds = array<i64: 16, 4>}, {pipeline_mode = #tpu.pipeline_mode<synchronous>, transform_indices = @transform_1, window_bounds = array<i64: 128, 128>}, {transform_indices = @transform_2, window_bounds = array<i64: 16, 36>}]} {
    %c0 = arith.constant 0 : index
    %c0_0 = arith.constant 0 : index
    %0 = vector.load %arg1[%c0, %c0_0] : memref<16x4xi32, #tpu.memory_space<vmem>>, vector<16x4xi32>
    %c0_1 = arith.constant 0 : index
    %c0_2 = arith.constant 0 : index
    %1 = vector.load %arg2[%c0_1, %c0_2] : memref<128x128xf32, #tpu.memory_space<vmem>>, vector<128x128xf32>
    %2 = tpu.iota {dimensions = array<i32: 1>} : vector<16x128xi32>
    %3 = vector.extract_strided_slice %0 {offsets = [0, 0], sizes = [16, 1], strides = [1, 1]} : vector<16x4xi32> to vector<16x1xi32>
    %c0_i32 = arith.constant 0 : i32
    %c15_i32 = arith.constant 15 : i32
    %4 = vector.broadcast %c0_i32 : i32 to vector<16x1xi32>
    %5 = arith.maxsi %4, %3 : vector<16x1xi32>
    %6 = vector.broadcast %c15_i32 : i32 to vector<16x1xi32>
    %7 = arith.minsi %6, %5 : vector<16x1xi32>
    %c0_i32_3 = arith.constant 0 : i32
    %8 = vector.broadcast %c0_i32_3 : i32 to vector<16x1xi32>
    %9 = arith.addi %7, %8 : vector<16x1xi32>
    %10 = vector.broadcast %9 : vector<16x1xi32> to vector<16x128xi32>
    %11 = arith.cmpi eq, %2, %10 : vector<16x128xi32>
    %12 = vector.extract_strided_slice %0 {offsets = [0, 1], sizes = [16, 1], strides = [1, 1]} : vector<16x4xi32> to vector<16x1xi32>
    %c0_i32_4 = arith.constant 0 : i32
    %c23_i32 = arith.constant 23 : i32
    %13 = vector.broadcast %c0_i32_4 : i32 to vector<16x1xi32>
    %14 = arith.maxsi %13, %12 : vector<16x1xi32>
    %15 = vector.broadcast %c23_i32 : i32 to vector<16x1xi32>
    %16 = arith.minsi %15, %14 : vector<16x1xi32>
    %c16_i32 = arith.constant 16 : i32
    %17 = vector.broadcast %c16_i32 : i32 to vector<16x1xi32>
    %18 = arith.addi %16, %17 : vector<16x1xi32>
    %19 = vector.broadcast %18 : vector<16x1xi32> to vector<16x128xi32>
    %20 = arith.cmpi eq, %2, %19 : vector<16x128xi32>
    %21 = arith.ori %11, %20 : vector<16x128xi1>
    %22 = vector.extract_strided_slice %0 {offsets = [0, 2], sizes = [16, 1], strides = [1, 1]} : vector<16x4xi32> to vector<16x1xi32>
    %c0_i32_5 = arith.constant 0 : i32
    %c31_i32 = arith.constant 31 : i32
    %23 = vector.broadcast %c0_i32_5 : i32 to vector<16x1xi32>
    %24 = arith.maxsi %23, %22 : vector<16x1xi32>
    %25 = vector.broadcast %c31_i32 : i32 to vector<16x1xi32>
    %26 = arith.minsi %25, %24 : vector<16x1xi32>
    %c40_i32 = arith.constant 40 : i32
    %27 = vector.broadcast %c40_i32 : i32 to vector<16x1xi32>
    %28 = arith.addi %26, %27 : vector<16x1xi32>
    %29 = vector.broadcast %28 : vector<16x1xi32> to vector<16x128xi32>
    %30 = arith.cmpi eq, %2, %29 : vector<16x128xi32>
    %31 = arith.ori %21, %30 : vector<16x128xi1>
    %32 = vector.extract_strided_slice %0 {offsets = [0, 3], sizes = [16, 1], strides = [1, 1]} : vector<16x4xi32> to vector<16x1xi32>
    %c0_i32_6 = arith.constant 0 : i32
    %c19_i32 = arith.constant 19 : i32
    %33 = vector.broadcast %c0_i32_6 : i32 to vector<16x1xi32>
    %34 = arith.maxsi %33, %32 : vector<16x1xi32>
    %35 = vector.broadcast %c19_i32 : i32 to vector<16x1xi32>
    %36 = arith.minsi %35, %34 : vector<16x1xi32>
    %c72_i32 = arith.constant 72 : i32
    %37 = vector.broadcast %c72_i32 : i32 to vector<16x1xi32>
    %38 = arith.addi %36, %37 : vector<16x1xi32>
    %39 = vector.broadcast %38 : vector<16x1xi32> to vector<16x128xi32>
    %40 = arith.cmpi eq, %2, %39 : vector<16x128xi32>
    %41 = arith.ori %31, %40 : vector<16x128xi1>
    %42 = arith.extui %41 : vector<16x128xi1> to vector<16x128xi32>
    %43 = arith.sitofp %42 : vector<16x128xi32> to vector<16x128xf32>
    %cst = arith.constant dense<0.000000e+00> : vector<16x128xf32>
    %44 = tpu.matmul %43, %1, %cst {dimension_numbers = #tpu.dot_dimension_numbers<[1], [0], [0], [1], [0, 0, 1, 1], [], []>} : vector<16x128xf32>, vector<128x128xf32>, vector<16x128xf32> -> vector<16x128xf32>
    %45 = vector.extract_strided_slice %44 {offsets = [0, 0], sizes = [16, 36], strides = [1, 1]} : vector<16x128xf32> to vector<16x36xf32>
    %c0_7 = arith.constant 0 : index
    %c0_8 = arith.constant 0 : index
    %46 = vector.load %arg3[%c0_7, %c0_8] : memref<16x36xf32, #tpu.memory_space<vmem>>, vector<16x36xf32>
    tpu.vector_store %arg3[%c0_7, %c0_8], %45 {strides = array<i32>} : memref<16x36xf32, #tpu.memory_space<vmem>>, vector<16x36xf32>,
    return
  }
  func.func @transform_0(%arg0: i32) -> (i32, i32) {
    %c0_i32 = arith.constant 0 : i32
    %c0_i32_0 = arith.constant 0 : i32
    return %arg0, %c0_i32 : i32, i32
  }
  func.func @transform_1(%arg0: i32) -> (i32, i32) {
    %c0_i32 = arith.constant 0 : i32
    %c0_i32_0 = arith.constant 0 : i32
    %c0_i32_1 = arith.constant 0 : i32
    return %c0_i32, %c0_i32_0 : i32, i32
  }
  func.func @transform_2(%arg0: i32) -> (i32, i32) {
    %c0_i32 = arith.constant 0 : i32
    %c0_i32_0 = arith.constant 0 : i32
    return %arg0, %c0_i32 : i32, i32
  }
}

</mosaic_0001>

<llo_original>
// kernel: tpu_custom_call.1
$region0: #{tpu_custom_call.1}
  #allocation0 [shape = 'u32[]', space=smem, size = 0x4, offset = 0x4, fixed_abs, tag = 'smem constant byte address 0x4 - core index']
  #allocation1 [shape = 'u32[144,128]{1,0:T(1,128)}', space=vmem, size = 0x12000, scoped, tag = 'internal scratch']
  %s0 = inlined_call_operand.vmem [shape: s32[16,4], index: 0, kind: input, shape index: {}]
  %s1 = inlined_call_operand.hbm [shape: f32[128,128], index: 1, kind: input, shape index: {}]
  %s2 = inlined_call_operand.hbm [shape: f32[16,36], index: 2, kind: output, shape index: {}]
  %s3 = sld [smem:[#allocation0]]
  $region22: #{tpu_custom_call.1} parent=0
    _
  %s5 = ssub.s32 1, %s3
  %s6 = scalar_select 0, %s5, %s3
  $region1: #{tpu_custom_call.1} parent=0
    #allocation2 [shape = 'u8[65536]{0}', space=vmem, size = 0x10000, scoped, tag = 'input window, operand 1, single buffered']
    #allocation3 [shape = 's32[1]{0}', space=sflag, size = 0x4, scoped, tag = 'scoped memory for tpu_custom_call.1']
    #allocation4 [shape = 's32[1]{0}', space=sflag, size = 0x4, scoped, tag = 'scoped memory for tpu_custom_call.1']
    #allocation5 [shape = 'u8[8192]{0}', space=vmem, size = 0x2000, scoped, tag = 'output window, operand 0, single buffered']
    %7 = vsyncpa [#allocation3], 0
    %8 = vsyncpa [#allocation4], 0
    // Predicated region
    $region2: #{tpu_custom_call.1} parent=1 // pred_check
      _
    $region3: #{tpu_custom_call.1} parent=1 // pred_check_branch
      %10 = sbr.rel (0) target = $region5
    $region4: #{tpu_custom_call.1} parent=1 // pred_region
      _
    $region5: #{tpu_custom_call.1} parent=1 // pred_fallthru
      _
    // Predicated region
    $region6: #{tpu_custom_call.1} parent=1 // pred_check
      _
    $region7: #{tpu_custom_call.1} parent=1 // pred_check_branch
      %12 = sbr.rel (0) target = $region9
    $region8: #{tpu_custom_call.1} parent=1 // pred_region
      %s14 = ssub.s32 2048, 2048
      %15 = vsyncadd [#allocation3], %s14
      %s16 = sshll.u32 [#allocation2], 4
      %s17 = int_to_ptr.vmem [resolvable:$true] %s16
      %22 = dma.hbm_to_vmem [thread:$0]  %s1, 2048, %s17, [#allocation3], 128, 128, 8
    $region9: #{tpu_custom_call.1} parent=1 // pred_fallthru
      _
    // Predicated region
    $region10: #{tpu_custom_call.1} parent=1 // pred_check
      _
    $region11: #{tpu_custom_call.1} parent=1 // pred_check_branch
      %24 = sbr.rel (0) target = $region13
    $region12: #{tpu_custom_call.1} parent=1 // pred_region
      %25 = dma.done [#allocation3], 2048
    $region13: #{tpu_custom_call.1} parent=1 // pred_fallthru
      _
    %v26 = vld [vmem:[%s0] sm:$0xff]
    %v27 = vld [vmem:[%s0 + $0x8] sm:$0xff]
    %v28 = vld [vmem:[#allocation2] sm:$0xff]
    %v29 = vld [vmem:[#allocation2 + $0x8] sm:$0xff]
    %v30 = vld [vmem:[#allocation2 + $0x10] sm:$0xff]
    %v31 = vld [vmem:[#allocation2 + $0x18] sm:$0xff]
    %v32 = vld [vmem:[#allocation2 + $0x20] sm:$0xff]
    %v33 = vld [vmem:[#allocation2 + $0x28] sm:$0xff]
    %v34 = vld [vmem:[#allocation2 + $0x30] sm:$0xff]
    %v35 = vld [vmem:[#allocation2 + $0x38] sm:$0xff]
    %v36 = vld [vmem:[#allocation2 + $0x40] sm:$0xff]
    %v37 = vld [vmem:[#allocation2 + $0x48] sm:$0xff]
    %v38 = vld [vmem:[#allocation2 + $0x50] sm:$0xff]
    %v39 = vld [vmem:[#allocation2 + $0x58] sm:$0xff]
    %v40 = vld [vmem:[#allocation2 + $0x60] sm:$0xff]
    %v41 = vld [vmem:[#allocation2 + $0x68] sm:$0xff]
    %v42 = vld [vmem:[#allocation2 + $0x70] sm:$0xff]
    %v43 = vld [vmem:[#allocation2 + $0x78] sm:$0xff]
    %v44 = vlaneseq
    %v45 = vand.u32 %v44, 127
    %vm46 = vcmp.gt.s32.totalorder %v26, 0
    %v47 = vsel %vm46, %v26, 0
    %vm48 = vcmp.gt.s32.totalorder %v27, 0
    %v49 = vsel %vm48, %v27, 0
    %vm50 = vcmp.lt.s32.totalorder %v47, 15
    %v51 = vsel %vm50, %v47, 15
    %vm52 = vcmp.lt.s32.totalorder %v49, 15
    %v53 = vsel %vm52, %v49, 15
    %54 = vset.pattern.permute.xlu0 0
    %55 = vperm.xlu0 %54, %v51
    %v56 = vpop.permute.xlu0 %55
    %57 = vset.pattern.permute.xlu0 0
    %58 = vperm.xlu0 %57, %v53
    %v59 = vpop.permute.xlu0 %58
    %vm60 = vcmp.eq.s32.totalorder %v45, %v56
    %vm61 = vcmp.eq.s32.totalorder %v45, %v59
    %vm62 = vcmp.lt.s32.totalorder %v47, 23
    %v63 = vsel %vm62, %v47, 23
    %vm64 = vcmp.lt.s32.totalorder %v49, 23
    %v65 = vsel %vm64, %v49, 23
    %v66 = vadd.s32 %v63, 16
    %v67 = vadd.s32 %v65, 16
    %68 = vset.pattern.permute.xlu0 1
    %69 = vperm.xlu0 %68, %v66
    %v70 = vpop.permute.xlu0 %69
    %71 = vset.pattern.permute.xlu0 1
    %72 = vperm.xlu0 %71, %v67
    %v73 = vpop.permute.xlu0 %72
    %vm74 = vcmp.eq.s32.totalorder %v45, %v70
    %vm75 = vcmp.eq.s32.totalorder %v45, %v73
    %vm76 = vmor %vm60, %vm74
    %vm77 = vmor %vm61, %vm75
    %vm78 = vcmp.lt.s32.totalorder %v47, 31
    %v79 = vsel %vm78, %v47, 31
    %vm80 = vcmp.lt.s32.totalorder %v49, 31
    %v81 = vsel %vm80, %v49, 31
    %v82 = vadd.s32 %v79, 40
    %v83 = vadd.s32 %v81, 40
    %84 = vset.pattern.permute.xlu0 2
    %85 = vperm.xlu0 %84, %v82
    %v86 = vpop.permute.xlu0 %85
    %87 = vset.pattern.permute.xlu0 2
    %88 = vperm.xlu0 %87, %v83
    %v89 = vpop.permute.xlu0 %88
    %vm90 = vcmp.eq.s32.totalorder %v45, %v86
    %vm91 = vcmp.eq.s32.totalorder %v45, %v89
    %vm92 = vmor %vm76, %vm90
    %vm93 = vmor %vm77, %vm91
    %vm94 = vcmp.lt.s32.totalorder %v47, 19
    %v95 = vsel %vm94, %v47, 19
    %vm96 = vcmp.lt.s32.totalorder %v49, 19
    %v97 = vsel %vm96, %v49, 19
    %v98 = vadd.s32 %v95, 72
    %v99 = vadd.s32 %v97, 72
    %100 = vset.pattern.permute.xlu0 3
    %101 = vperm.xlu0 %100, %v98
    %v102 = vpop.permute.xlu0 %101
    %103 = vset.pattern.permute.xlu0 3
    %104 = vperm.xlu0 %103, %v99
    %v105 = vpop.permute.xlu0 %104
    %vm106 = vcmp.eq.s32.totalorder %v45, %v102
    %vm107 = vcmp.eq.s32.totalorder %v45, %v105
    %vm108 = vmor %vm92, %vm106
    %vm109 = vmor %vm93, %vm107
    %v110 = vsel %vm108, 1, 0
    %v111 = vsel %vm109, 1, 0
    %v112 = vcvt.s32.f32 %v110
    %v113 = vcvt.s32.f32 %v111
    %114 = vmatprep.subr.mxu0 0.0
    %115 = vmatpush1.msra.mxu0 %v43
    %116 = vmatprep.subr.mxu0 0.0
    %117 = vmatpush1.msra.mxu0 %v42
    %118 = vmatprep.subr.mxu0 0.0
    %119 = vmatpush1.msra.mxu0 %v41
    %120 = vmatprep.subr.mxu0 0.0
    %121 = vmatpush1.msra.mxu0 %v40
    %122 = vmatprep.subr.mxu0 0.0
    %123 = vmatpush1.msra.mxu0 %v39
    %124 = vmatprep.subr.mxu0 0.0
    %125 = vmatpush1.msra.mxu0 %v38
    %126 = vmatprep.subr.mxu0 0.0
    %127 = vmatpush1.msra.mxu0 %v37
    %128 = vmatprep.subr.mxu0 0.0
    %129 = vmatpush1.msra.mxu0 %v36
    %130 = vmatprep.subr.mxu0 0.0
    %131 = vmatpush1.msra.mxu0 %v35
    %132 = vmatprep.subr.mxu0 0.0
    %133 = vmatpush1.msra.mxu0 %v34
    %134 = vmatprep.subr.mxu0 0.0
    %135 = vmatpush1.msra.mxu0 %v33
    %136 = vmatprep.subr.mxu0 0.0
    %137 = vmatpush1.msra.mxu0 %v32
    %138 = vmatprep.subr.mxu0 0.0
    %139 = vmatpush1.msra.mxu0 %v31
    %140 = vmatprep.subr.mxu0 0.0
    %141 = vmatpush1.msra.mxu0 %v30
    %142 = vmatprep.subr.mxu0 0.0
    %143 = vmatpush1.msra.mxu0 %v29
    %144 = vmatprep.subr.mxu0 0.0
    %145 = vmatpush1.msra.mxu0 %v28
    %146 = vmatprep.subr.mxu0 0.0
    %147 = vmatpush2.msra.mxu0 0.0
    %148 = vmatprep.subr.mxu0 0.0
    %149 = vmatpush2.msra.mxu0 0.0
    %150 = vmatprep.subr.mxu0 0.0
    %151 = vmatpush2.msra.mxu0 0.0
    %152 = vmatprep.subr.mxu0 0.0
    %153 = vmatpush2.msra.mxu0 0.0
    %154 = vmatprep.subr.mxu0 0.0
    %155 = vmatpush2.msra.mxu0 0.0
    %156 = vmatprep.subr.mxu0 0.0
    %157 = vmatpush2.msra.mxu0 0.0
    %158 = vmatprep.subr.mxu0 0.0
    %159 = vmatpush2.msra.mxu0 0.0
    %160 = vmatprep.subr.mxu0 0.0
    %161 = vmatpush2.msra.mxu0 0.0
    %162 = vmatprep.subr.mxu0 0.0
    %163 = vmatpush2.msra.mxu0 0.0
    %164 = vmatprep.subr.mxu0 0.0
    %165 = vmatpush2.msra.mxu0 0.0
    %166 = vmatprep.subr.mxu0 0.0
    %167 = vmatpush2.msra.mxu0 0.0
    %168 = vmatprep.subr.mxu0 0.0
    %169 = vmatpush2.msra.mxu0 0.0
    %170 = vmatprep.subr.mxu0 0.0
    %171 = vmatpush2.msra.mxu0 0.0
    %172 = vmatprep.subr.mxu0 0.0
    %173 = vmatpush2.msra.mxu0 0.0
    %174 = vmatprep.subr.mxu0 0.0
    %175 = vmatpush2.msra.mxu0 0.0
    %176 = vmatprep.subr.mxu0 0.0
    %177 = vmatpush2.msra.mxu0 0.0
    %178 = vmatprep.mubr.f32.mxu0 0.0
    %179 = vmatmul.mubr.f32.gmra.mxu0 %v112
    %v180 = vpop.f32.mrf.mxu0
    %v181 = vadd.f32 0.0, %v180
    %v182 = vpop.f32.mrf.mxu0
    %183 = vmatprep.mubr.f32.mxu0 0.0
    %184 = vmatmul.mubr.f32.gmra.mxu0 %v113
    %v185 = vpop.f32.mrf.mxu0
    %v186 = vadd.f32 0.0, %v185
    %v187 = vpop.f32.mrf.mxu0
    %188 = vdwg.mxu0
    %vm189 = vcmask 293888
    %190 = vst.msk [vmem:[#allocation5] sm:$0xff] %vm189, %v181
    %191 = vst.msk [vmem:[#allocation5 + $0x8] sm:$0xff] %vm189, %v186
    // Predicated region
    $region14: #{tpu_custom_call.1} parent=1 // pred_check
      _
    $region15: #{tpu_custom_call.1} parent=1 // pred_check_branch
      %193 = sbr.rel (0) target = $region17
    $region16: #{tpu_custom_call.1} parent=1 // pred_region
      %s195 = ssub.s32 256, 256
      %196 = vsyncadd [#allocation4], %s195
      %s197 = sshll.u32 [#allocation5], 4
      %s198 = int_to_ptr.vmem [resolvable:$true] %s197
      %203 = dma.vmem_to_hbm [thread:$0]  %s198, 256, %s2, [#allocation4], 128, 128, 8
    $region17: #{tpu_custom_call.1} parent=1 // pred_fallthru
      _
    // Predicated region
    $region18: #{tpu_custom_call.1} parent=1 // pred_check
      _
    $region19: #{tpu_custom_call.1} parent=1 // pred_check_branch
      %205 = sbr.rel (0) target = $region21
    $region20: #{tpu_custom_call.1} parent=1 // pred_region
      %206 = dma.done [#allocation4], 256
    $region21: #{tpu_custom_call.1} parent=1 // pred_fallthru
      _
    %207 = vsyncpa [#allocation3], 1
    %208 = vsyncpa [#allocation4], 1

</llo_original>
